<compile_context>
chip_gen: v7x
topology: tpu7x:2x2x1
jax: 0.10.0
libtpu: 0.0.40
codegen_flags: <defaults>
</compile_context>

<pallas_src>
import jax
import jax.numpy as jnp
from jax.experimental import pallas as pl
from jax.experimental.pallas import tpu as pltpu


def _make_kernel(NB, C, THB, W, use_mxu):
    """Kernel over a (NB, C, THB, 2W) folded-input block."""
    Wh = W // 2
    W2 = 2 * W

    def kernel(x_ref, scale_ref, shift_ref, w_ref, b_ref, sel_ref, o_ref):
        # x_ref block: (NB, C, THB, 2W).  Each row holds a vertical H-pair
        # folded along the lane axis: [h=2*oh row | h=2*oh+1 row].
        x = x_ref[...].astype(jnp.float32)

        # BatchNorm (eval, folded to per-channel affine) + ReLU  -- VPU.
        scale = scale_ref[...][None]                       # (1, C, 1, 1)
        shift = shift_ref[...][None]
        z = jnp.maximum(x * scale + shift, 0.0)            # (NB, C, THB, 2W)

        bias = b_ref[...][None]                            # (1, C, 1, 1)
        if use_mxu:
            # Large C: 1x1 conv == channel matmul on the MXU (NB is forced to
            # 1 by the wrapper).  Spatial stays on the lane axis.
            zc = z.reshape(C, THB * W2)                    # (Cin, S)
            wv = w_ref[...]                                # (Cout, Cin)
            if x_ref.dtype == jnp.bfloat16:
                zc = zc.astype(jnp.bfloat16)
                wv = wv.astype(jnp.bfloat16)
            y2 = jnp.dot(wv, zc, preferred_element_type=jnp.float32)
            y = y2.reshape(NB, C, THB, W2) + bias
        else:
            # Small C: C unrolled VPU FMAs with spatial on lanes.  A K=C
            # matmul here would run at C/128 lane utilization on the MXU.
            wm = w_ref[...]                                # (Cout, Cin)
            acc = wm[:, 0:1][None, :, :, None] * z[:, 0:1]
            for i in range(1, C):
                acc = acc + wm[:, i:i + 1][None, :, :, None] * z[:, i:i + 1]
            y = acc + bias                                 # (NB, C, THB, 2W)

        # Dropout2d(p=0.2) is identity in eval mode.
        # TODO(synk): training-mode Dropout2d not implemented.

        # MaxPool2d(2), fused in registers (no VMEM scratch round trip):
        #   1) H-pair max: the pair lives in the same lane row -> static
        #      lane-half slices.
        #   2) W-pair max: compact even/odd columns with ONE 0/1 selection
        #      matmul (exact: one nonzero per column), then lane-half max.
        hmax = jnp.maximum(y[..., :W], y[..., W:])         # (NB, C, THB, W)
        rows = hmax.reshape(NB * C * THB, W)               # leading-dim merge
        eo = jnp.dot(rows, sel_ref[...], preferred_element_type=jnp.float32)
        pooled = jnp.maximum(eo[:, :Wh], eo[:, Wh:])       # (NB*C*THB, Wh)
        o_ref[...] = pooled.reshape(NB, C, THB, Wh).astype(o_ref.dtype)

    return kernel


def transition_down(x_nchw, gamma, beta, running_mean, running_var,
                    conv_w, conv_b, eps=1e-5):
    """Pallas TransitionDown forward. x_nchw: (N, C, H, W) -> (N, C, H//2, W//2)."""
    N, C, H, W = x_nchw.shape
    assert H % 2 == 0 and W % 2 == 0, "MaxPool2d(2) path requires even H and W"
    Hh, Wh = H // 2, W // 2
    W2 = 2 * W

    # Free, contiguous reshape (NOT a transpose): fold vertical H-pairs into
    # the last (lane) axis.  No extra HBM pass.
    x_folded = x_nchw.reshape(N, C, Hh, W2)

    # Fold BatchNorm (eval, running stats) into a per-channel affine.
    scale = (gamma / jnp.sqrt(running_var + eps)).astype(jnp.float32)
    shift = (beta - running_mean * scale).astype(jnp.float32)
    scale = scale.reshape(C, 1, 1)
    shift = shift.reshape(C, 1, 1)

    # PyTorch conv weight (Cout, Cin, 1, 1) -> (Cout, Cin): no transpose needed.
    w_mat = conv_w[:, :, 0, 0].astype(jnp.float32)
    bias = conv_b.astype(jnp.float32).reshape(C, 1, 1)

    # 0/1 column-selection matrix for the stride-2 W-pooling compaction:
    # columns [0:Wh) pick even input columns, [Wh:2Wh) pick odd columns.
    cols = jnp.arange(W)[:, None]
    outc = jnp.arange(Wh)[None, :]
    sel_even = (cols == 2 * outc).astype(jnp.float32)      # (W, Wh)
    sel_odd = (cols == 2 * outc + 1).astype(jnp.float32)   # (W, Wh)
    sel = jnp.concatenate([sel_even, sel_odd], axis=1)     # (W, 2*Wh)

    use_mxu = C >= 128

    # ---- tile selection: bound VMEM (fits default scoped VMEM on v5e/v6e/v7x)
    # THB = folded rows (= output rows) per grid step; must divide Hh and be a
    # multiple of 8 unless it takes the full extent ((8,128) tiling rule).
    budget = 2 * 1024 * 1024
    legal = [t for t in range(Hh, 0, -1) if Hh % t == 0 and (t == Hh or t % 8 == 0)]
    row_bytes = C * W2 * 4
    THB = legal[-1]
    for t in legal:
        if t * row_bytes <= budget:
            THB = t
            break

    # Batch elements per grid step: amortize per-step overhead for tiny shapes,
    # keep NB=1 for the large-C MXU path.
    blk_bytes = C * THB * W2 * 4
    if use_mxu:
        NB = 1
    else:
        NB = max(1, min(N, budget // max(1, blk_bytes)))
        while N % NB:
            NB -= 1

    grid = (N // NB, Hh // THB)
    kernel = _make_kernel(NB, C, THB, W, use_mxu)

    out = pl.pallas_call(
        kernel,
        out_shape=jax.ShapeDtypeStruct((N, C, Hh, Wh), x_nchw.dtype),
        grid_spec=pltpu.PrefetchScalarGridSpec(
            num_scalar_prefetch=0,
            grid=grid,
            in_specs=[
                pl.BlockSpec((NB, C, THB, W2), lambda n, h: (n, 0, h, 0)),
                pl.BlockSpec((C, 1, 1), lambda n, h: (0, 0, 0)),
                pl.BlockSpec((C, 1, 1), lambda n, h: (0, 0, 0)),
                pl.BlockSpec((C, C), lambda n, h: (0, 0)),
                pl.BlockSpec((C, 1, 1), lambda n, h: (0, 0, 0)),
                pl.BlockSpec((W, 2 * Wh), lambda n, h: (0, 0)),
            ],
            out_specs=pl.BlockSpec((NB, C, THB, Wh), lambda n, h: (n, 0, h, 0)),
        ),
        compiler_params=pltpu.CompilerParams(
            dimension_semantics=("parallel", "parallel")),
    )(x_folded, scale, shift, w_mat, bias, sel)

    return out  # already (N, C, H//2, W//2) -- no post-transpose/reshape needed


def _reference(x_nchw, gamma, beta, mean, var, conv_w, conv_b, eps=1e-5):
    """Pure-JAX reference matching eval-mode PyTorch semantics (NCHW)."""
    scale = (gamma / jnp.sqrt(var + eps)).reshape(1, -1, 1, 1)
    shift = (beta - mean * gamma / jnp.sqrt(var + eps)).reshape(1, -1, 1, 1)
    z = jnp.maximum(x_nchw * scale + shift, 0.0)
    w = conv_w[:, :, 0, 0]
    y = jnp.einsum('nihw,oi->nohw', z, w) + conv_b.reshape(1, -1, 1, 1)
    N, C, H, W = y.shape
    return y.reshape(N, C, H // 2, 2, W // 2, 2).max(axis=(3, 5))


if __name__ == "__main__":
    key = jax.random.PRNGKey(0)
    k_x, k_g, k_b, k_m, k_v, k_w, k_cb = jax.random.split(key, 7)

    N, C, H, W = 2, 4, 16, 16
    x = jax.random.normal(k_x, (N, C, H, W), dtype=jnp.float32)

    # Deterministic synthetic parameters (shapes from nn.Module __init__).
    gamma = 1.0 + 0.1 * jax.random.normal(k_g, (C,), dtype=jnp.float32)
    beta = 0.1 * jax.random.normal(k_b, (C,), dtype=jnp.float32)
    running_mean = 0.1 * jax.random.normal(k_m, (C,), dtype=jnp.float32)
    running_var = 0.5 + jnp.abs(jax.random.normal(k_v, (C,), dtype=jnp.float32))
    conv_w = 0.1 * jax.random.normal(k_w, (C, C, 1, 1), dtype=jnp.float32)
    conv_b = 0.1 * jax.random.normal(k_cb, (C,), dtype=jnp.float32)

    out = transition_down(x, gamma, beta, running_mean, running_var,
                          conv_w, conv_b)
    out = jax.block_until_ready(out)

    ref = _reference(x, gamma, beta, running_mean, running_var, conv_w, conv_b)
    assert out.shape == (N, C, H // 2, W // 2), out.shape
    assert jnp.allclose(out, ref, rtol=1e-4, atol=1e-5), \
        float(jnp.max(jnp.abs(out - ref)))

    print("KERNEL_OK")
</pallas_src>

<mosaic_0001>
module attributes {stable_mosaic.version = 11 : i64} {
  func.func @kernel(%arg0: i32, %arg1: i32, %arg2: memref<2x4x8x32xf32, #tpu.memory_space<vmem>>, %arg3: memref<4x1x1xf32, #tpu.memory_space<vmem>>, %arg4: memref<4x1x1xf32, #tpu.memory_space<vmem>>, %arg5: memref<4x4xf32, #tpu.memory_space<vmem>>, %arg6: memref<4x1x1xf32, #tpu.memory_space<vmem>>, %arg7: memref<16x16xf32, #tpu.memory_space<vmem>>, %arg8: memref<2x4x8x8xf32, #tpu.memory_space<vmem>>) attributes {dimension_semantics = [#tpu.dimension_semantics<parallel>, #tpu.dimension_semantics<parallel>], iteration_bounds = array<i64: 1, 1>, scalar_prefetch = 0 : i64, scratch_operands = 0 : i64, tpu.core_type = #tpu.core_type<tc>, window_params = [{transform_indices = @transform_0, window_bounds = array<i64: 2, 4, 8, 32>}, {pipeline_mode = #tpu.pipeline_mode<synchronous>, transform_indices = @transform_1, window_bounds = array<i64: 4, 1, 1>}, {pipeline_mode = #tpu.pipeline_mode<synchronous>, transform_indices = @transform_2, window_bounds = array<i64: 4, 1, 1>}, {pipeline_mode = #tpu.pipeline_mode<synchronous>, transform_indices = @transform_3, window_bounds = array<i64: 4, 4>}, {pipeline_mode = #tpu.pipeline_mode<synchronous>, transform_indices = @transform_4, window_bounds = array<i64: 4, 1, 1>}, {pipeline_mode = #tpu.pipeline_mode<synchronous>, transform_indices = @transform_5, window_bounds = array<i64: 16, 16>}, {transform_indices = @transform_6, window_bounds = array<i64: 2, 4, 8, 8>}]} {
    %c0 = arith.constant 0 : index
    %c0_0 = arith.constant 0 : index
    %c0_1 = arith.constant 0 : index
    %c0_2 = arith.constant 0 : index
    %0 = vector.load %arg2[%c0, %c0_0, %c0_1, %c0_2] : memref<2x4x8x32xf32, #tpu.memory_space<vmem>>, vector<2x4x8x32xf32>
    %c0_3 = arith.constant 0 : index
    %c0_4 = arith.constant 0 : index
    %c0_5 = arith.constant 0 : index
    %1 = vector.load %arg3[%c0_3, %c0_4, %c0_5] : memref<4x1x1xf32, #tpu.memory_space<vmem>>, vector<4x1x1xf32>
    %2 = vector.shape_cast %1 : vector<4x1x1xf32> to vector<1x4x1x1xf32>
    %c0_6 = arith.constant 0 : index
    %c0_7 = arith.constant 0 : index
    %c0_8 = arith.constant 0 : index
    %3 = vector.load %arg4[%c0_6, %c0_7, %c0_8] : memref<4x1x1xf32, #tpu.memory_space<vmem>>, vector<4x1x1xf32>
    %4 = vector.shape_cast %3 : vector<4x1x1xf32> to vector<1x4x1x1xf32>
    %5 = vector.broadcast %2 : vector<1x4x1x1xf32> to vector<2x4x8x32xf32>
    %6 = arith.mulf %0, %5 : vector<2x4x8x32xf32>
    %7 = vector.broadcast %4 : vector<1x4x1x1xf32> to vector<2x4x8x32xf32>
    %8 = arith.addf %6, %7 : vector<2x4x8x32xf32>
    %cst = arith.constant 0.000000e+00 : f32
    %9 = vector.broadcast %cst : f32 to vector<2x4x8x32xf32>
    %10 = arith.maximumf %8, %9 : vector<2x4x8x32xf32>
    %c0_9 = arith.constant 0 : index
    %c0_10 = arith.constant 0 : index
    %c0_11 = arith.constant 0 : index
    %11 = vector.load %arg6[%c0_9, %c0_10, %c0_11] : memref<4x1x1xf32, #tpu.memory_space<vmem>>, vector<4x1x1xf32>
    %12 = vector.shape_cast %11 : vector<4x1x1xf32> to vector<1x4x1x1xf32>
    %c0_12 = arith.constant 0 : index
    %c0_13 = arith.constant 0 : index
    %13 = vector.load %arg5[%c0_12, %c0_13] : memref<4x4xf32, #tpu.memory_space<vmem>>, vector<4x4xf32>
    %14 = vector.extract_strided_slice %13 {offsets = [0, 0], sizes = [4, 1], strides = [1, 1]} : vector<4x4xf32> to vector<4x1xf32>
    %15 = vector.shape_cast %14 : vector<4x1xf32> to vector<1x4x1x1xf32>
    %16 = vector.extract_strided_slice %10 {offsets = [0, 0, 0, 0], sizes = [2, 1, 8, 32], strides = [1, 1, 1, 1]} : vector<2x4x8x32xf32> to vector<2x1x8x32xf32>
    %17 = vector.broadcast %15 : vector<1x4x1x1xf32> to vector<2x4x8x32xf32>
    %18 = vector.broadcast %16 : vector<2x1x8x32xf32> to vector<2x4x8x32xf32>
    %19 = arith.mulf %17, %18 : vector<2x4x8x32xf32>
    %20 = vector.extract_strided_slice %13 {offsets = [0, 1], sizes = [4, 1], strides = [1, 1]} : vector<4x4xf32> to vector<4x1xf32>
    %21 = vector.shape_cast %20 : vector<4x1xf32> to vector<1x4x1x1xf32>
    %22 = vector.extract_strided_slice %10 {offsets = [0, 1, 0, 0], sizes = [2, 1, 8, 32], strides = [1, 1, 1, 1]} : vector<2x4x8x32xf32> to vector<2x1x8x32xf32>
    %23 = vector.broadcast %21 : vector<1x4x1x1xf32> to vector<2x4x8x32xf32>
    %24 = vector.broadcast %22 : vector<2x1x8x32xf32> to vector<2x4x8x32xf32>
    %25 = arith.mulf %23, %24 : vector<2x4x8x32xf32>
    %26 = arith.addf %19, %25 : vector<2x4x8x32xf32>
    %27 = vector.extract_strided_slice %13 {offsets = [0, 2], sizes = [4, 1], strides = [1, 1]} : vector<4x4xf32> to vector<4x1xf32>
    %28 = vector.shape_cast %27 : vector<4x1xf32> to vector<1x4x1x1xf32>
    %29 = vector.extract_strided_slice %10 {offsets = [0, 2, 0, 0], sizes = [2, 1, 8, 32], strides = [1, 1, 1, 1]} : vector<2x4x8x32xf32> to vector<2x1x8x32xf32>
    %30 = vector.broadcast %28 : vector<1x4x1x1xf32> to vector<2x4x8x32xf32>
    %31 = vector.broadcast %29 : vector<2x1x8x32xf32> to vector<2x4x8x32xf32>
    %32 = arith.mulf %30, %31 : vector<2x4x8x32xf32>
    %33 = arith.addf %26, %32 : vector<2x4x8x32xf32>
    %34 = vector.extract_strided_slice %13 {offsets = [0, 3], sizes = [4, 1], strides = [1, 1]} : vector<4x4xf32> to vector<4x1xf32>
    %35 = vector.shape_cast %34 : vector<4x1xf32> to vector<1x4x1x1xf32>
    %36 = vector.extract_strided_slice %10 {offsets = [0, 3, 0, 0], sizes = [2, 1, 8, 32], strides = [1, 1, 1, 1]} : vector<2x4x8x32xf32> to vector<2x1x8x32xf32>
    %37 = vector.broadcast %35 : vector<1x4x1x1xf32> to vector<2x4x8x32xf32>
    %38 = vector.broadcast %36 : vector<2x1x8x32xf32> to vector<2x4x8x32xf32>
    %39 = arith.mulf %37, %38 : vector<2x4x8x32xf32>
    %40 = arith.addf %33, %39 : vector<2x4x8x32xf32>
    %41 = vector.broadcast %12 : vector<1x4x1x1xf32> to vector<2x4x8x32xf32>
    %42 = arith.addf %40, %41 : vector<2x4x8x32xf32>
    %43 = vector.extract_strided_slice %42 {offsets = [0, 0, 0, 0], sizes = [2, 4, 8, 16], strides = [1, 1, 1, 1]} : vector<2x4x8x32xf32> to vector<2x4x8x16xf32>
    %44 = vector.extract_strided_slice %42 {offsets = [0, 0, 0, 16], sizes = [2, 4, 8, 16], strides = [1, 1, 1, 1]} : vector<2x4x8x32xf32> to vector<2x4x8x16xf32>
    %45 = arith.maximumf %43, %44 : vector<2x4x8x16xf32>
    %46 = vector.shape_cast %45 : vector<2x4x8x16xf32> to vector<64x16xf32>
    %c0_14 = arith.constant 0 : index
    %c0_15 = arith.constant 0 : index
    %47 = vector.load %arg7[%c0_14, %c0_15] : memref<16x16xf32, #tpu.memory_space<vmem>>, vector<16x16xf32>
    %cst_16 = arith.constant dense<0.000000e+00> : vector<64x16xf32>
    %48 = tpu.matmul %46, %47, %cst_16 {dimension_numbers = #tpu.dot_dimension_numbers<[1], [0], [0], [1], [0, 0, 1, 1], [], []>} : vector<64x16xf32>, vector<16x16xf32>, vector<64x16xf32> -> vector<64x16xf32>
    %49 = vector.extract_strided_slice %48 {offsets = [0, 0], sizes = [64, 8], strides = [1, 1]} : vector<64x16xf32> to vector<64x8xf32>
    %50 = vector.extract_strided_slice %48 {offsets = [0, 8], sizes = [64, 8], strides = [1, 1]} : vector<64x16xf32> to vector<64x8xf32>
    %51 = arith.maximumf %49, %50 : vector<64x8xf32>
    %52 = vector.shape_cast %51 : vector<64x8xf32> to vector<2x4x8x8xf32>
    %c0_17 = arith.constant 0 : index
    %c0_18 = arith.constant 0 : index
    %c0_19 = arith.constant 0 : index
    %c0_20 = arith.constant 0 : index
    %53 = vector.load %arg8[%c0_17, %c0_18, %c0_19, %c0_20] : memref<2x4x8x8xf32, #tpu.memory_space<vmem>>, vector<2x4x8x8xf32>
    tpu.vector_store %arg8[%c0_17, %c0_18, %c0_19, %c0_20], %52 {strides = array<i32>} : memref<2x4x8x8xf32, #tpu.memory_space<vmem>>, vector<2x4x8x8xf32>,
    return
  }
  func.func @transform_0(%arg0: i32, %arg1: i32) -> (i32, i32, i32, i32) {
    %c0_i32 = arith.constant 0 : i32
    %c0_i32_0 = arith.constant 0 : i32
    %c0_i32_1 = arith.constant 0 : i32
    return %arg0, %c0_i32, %arg1, %c0_i32_0 : i32, i32, i32, i32
  }
  func.func @transform_1(%arg0: i32, %arg1: i32) -> (i32, i32, i32) {
    %c0_i32 = arith.constant 0 : i32
    %c0_i32_0 = arith.constant 0 : i32
    %c0_i32_1 = arith.constant 0 : i32
    %c0_i32_2 = arith.constant 0 : i32
    return %c0_i32, %c0_i32_0, %c0_i32_1 : i32, i32, i32
  }
  func.func @transform_2(%arg0: i32, %arg1: i32) -> (i32, i32, i32) {
    %c0_i32 = arith.constant 0 : i32
    %c0_i32_0 = arith.constant 0 : i32
    %c0_i32_1 = arith.constant 0 : i32
    %c0_i32_2 = arith.constant 0 : i32
    return %c0_i32, %c0_i32_0, %c0_i32_1 : i32, i32, i32
  }
  func.func @transform_3(%arg0: i32, %arg1: i32) -> (i32, i32) {
    %c0_i32 = arith.constant 0 : i32
    %c0_i32_0 = arith.constant 0 : i32
    %c0_i32_1 = arith.constant 0 : i32
    return %c0_i32, %c0_i32_0 : i32, i32
  }
  func.func @transform_4(%arg0: i32, %arg1: i32) -> (i32, i32, i32) {
    %c0_i32 = arith.constant 0 : i32
    %c0_i32_0 = arith.constant 0 : i32
    %c0_i32_1 = arith.constant 0 : i32
    %c0_i32_2 = arith.constant 0 : i32
    return %c0_i32, %c0_i32_0, %c0_i32_1 : i32, i32, i32
  }
  func.func @transform_5(%arg0: i32, %arg1: i32) -> (i32, i32) {
    %c0_i32 = arith.constant 0 : i32
    %c0_i32_0 = arith.constant 0 : i32
    %c0_i32_1 = arith.constant 0 : i32
    return %c0_i32, %c0_i32_0 : i32, i32
  }
  func.func @transform_6(%arg0: i32, %arg1: i32) -> (i32, i32, i32, i32) {
    %c0_i32 = arith.constant 0 : i32
    %c0_i32_0 = arith.constant 0 : i32
    %c0_i32_1 = arith.constant 0 : i32
    return %arg0, %c0_i32, %arg1, %c0_i32_0 : i32, i32, i32, i32
  }
}

</mosaic_0001>

<llo_original>
// kernel: tpu_custom_call.1
$region0: #{tpu_custom_call.1}
  #allocation0 [shape = 'u32[]', space=smem, size = 0x4, offset = 0x4, fixed_abs, tag = 'smem constant byte address 0x4 - core index']
  #allocation1 [shape = 'u32[144,128]{1,0:T(1,128)}', space=vmem, size = 0x12000, scoped, tag = 'internal scratch']
  %s0 = inlined_call_operand.hbm [shape: f32[2,4,8,32], index: 0, kind: input, shape index: {}]
  %s1 = inlined_call_operand.vmem [shape: f32[4,1,1], index: 1, kind: input, shape index: {}]
  %s2 = inlined_call_operand.vmem [shape: f32[4,1,1], index: 2, kind: input, shape index: {}]
  %s3 = inlined_call_operand.vmem [shape: f32[4,4], index: 3, kind: input, shape index: {}]
  %s4 = inlined_call_operand.vmem [shape: f32[4,1,1], index: 4, kind: input, shape index: {}]
  %s5 = inlined_call_operand.vmem [shape: f32[16,16], index: 5, kind: input, shape index: {}]
  %s6 = inlined_call_operand.hbm [shape: f32[2,4,8,8], index: 6, kind: output, shape index: {}]
  %s7 = sld [smem:[#allocation0]]
  $region38: #{tpu_custom_call.1} parent=0
    _
  %s9 = ssub.s32 1, %s7
  %s10 = scalar_select 0, %s9, %s7
  $region1: #{tpu_custom_call.1} parent=0
    #allocation2 [shape = 'u8[32768]{0}', space=vmem, size = 0x8000, scoped, tag = 'input window, operand 0, single buffered']
    #allocation3 [shape = 's32[1]{0}', space=sflag, size = 0x4, scoped, tag = 'scoped memory for tpu_custom_call.1']
    #allocation4 [shape = 's32[1]{0}', space=sflag, size = 0x4, scoped, tag = 'scoped memory for tpu_custom_call.1']
    #allocation5 [shape = 'u8[32768]{0}', space=vmem, size = 0x8000, scoped, tag = 'output window, operand 0, single buffered']
    %11 = vsyncpa [#allocation3], 0
    %12 = vsyncpa [#allocation4], 0
    // Predicated region
    $region2: #{tpu_custom_call.1} parent=1 // pred_check
      _
    $region3: #{tpu_custom_call.1} parent=1 // pred_check_branch
      %14 = sbr.rel (0) target = $region5
    $region4: #{tpu_custom_call.1} parent=1 // pred_region
      %s16 = ssub.s32 1024, 1024
      %17 = vsyncadd [#allocation3], %s16
      %s18 = sshll.u32 [#allocation2], 4
      %s19 = int_to_ptr.vmem [resolvable:$true] %s18
      %24 = dma.hbm_to_vmem [thread:$0]  %s0, 1024, %s19, [#allocation3], 128, 128, 8
    $region5: #{tpu_custom_call.1} parent=1 // pred_fallthru
      _
    // Predicated region
    $region6: #{tpu_custom_call.1} parent=1 // pred_check
      _
    $region7: #{tpu_custom_call.1} parent=1 // pred_check_branch
      %26 = sbr.rel (0) target = $region9
    $region8: #{tpu_custom_call.1} parent=1 // pred_region
      _
    $region9: #{tpu_custom_call.1} parent=1 // pred_fallthru
      _
    // Predicated region
    $region10: #{tpu_custom_call.1} parent=1 // pred_check
      _
    $region11: #{tpu_custom_call.1} parent=1 // pred_check_branch
      %28 = sbr.rel (0) target = $region13
    $region12: #{tpu_custom_call.1} parent=1 // pred_region
      _
    $region13: #{tpu_custom_call.1} parent=1 // pred_fallthru
      _
    // Predicated region
    $region14: #{tpu_custom_call.1} parent=1 // pred_check
      _
    $region15: #{tpu_custom_call.1} parent=1 // pred_check_branch
      %30 = sbr.rel (0) target = $region17
    $region16: #{tpu_custom_call.1} parent=1 // pred_region
      _
    $region17: #{tpu_custom_call.1} parent=1 // pred_fallthru
      _
    // Predicated region
    $region18: #{tpu_custom_call.1} parent=1 // pred_check
      _
    $region19: #{tpu_custom_call.1} parent=1 // pred_check_branch
      %32 = sbr.rel (0) target = $region21
    $region20: #{tpu_custom_call.1} parent=1 // pred_region
      _
    $region21: #{tpu_custom_call.1} parent=1 // pred_fallthru
      _
    // Predicated region
    $region22: #{tpu_custom_call.1} parent=1 // pred_check
      _
    $region23: #{tpu_custom_call.1} parent=1 // pred_check_branch
      %34 = sbr.rel (0) target = $region25
    $region24: #{tpu_custom_call.1} parent=1 // pred_region
      _
    $region25: #{tpu_custom_call.1} parent=1 // pred_fallthru
      _
    // Predicated region
    $region26: #{tpu_custom_call.1} parent=1 // pred_check
      _
    $region27: #{tpu_custom_call.1} parent=1 // pred_check_branch
      %36 = sbr.rel (0) target = $region29
    $region28: #{tpu_custom_call.1} parent=1 // pred_region
      %37 = dma.done [#allocation3], 1024
    $region29: #{tpu_custom_call.1} parent=1 // pred_fallthru
      _
    %v38 = vld [vmem:[#allocation2] sm:$0xff]
    %v39 = vld [vmem:[#allocation2 + $0x8] sm:$0xff]
    %v40 = vld [vmem:[#allocation2 + $0x10] sm:$0xff]
    %v41 = vld [vmem:[#allocation2 + $0x18] sm:$0xff]
    %v42 = vld [vmem:[#allocation2 + $0x20] sm:$0xff]
    %v43 = vld [vmem:[#allocation2 + $0x28] sm:$0xff]
    %v44 = vld [vmem:[#allocation2 + $0x30] sm:$0xff]
    %v45 = vld [vmem:[#allocation2 + $0x38] sm:$0xff]
    %v46 = vld [vmem:[%s1] sm:$0x1]
    %v47 = vld [vmem:[%s1 + $0x1] sm:$0x1]
    %v48 = vld [vmem:[%s1 + $0x2] sm:$0x1]
    %v49 = vld [vmem:[%s1 + $0x3] sm:$0x1]
    %v50 = vld [vmem:[%s2] sm:$0x1]
    %v51 = vld [vmem:[%s2 + $0x1] sm:$0x1]
    %v52 = vld [vmem:[%s2 + $0x2] sm:$0x1]
    %v53 = vld [vmem:[%s2 + $0x3] sm:$0x1]
    %v58 = vlaneseq
    %v59 = vshrl.u32 %v58, 7
    %v60 = vsub.s32 0, %v59
    %v61 = vrot.slane %v46, %v60
    %v62 = vlaneseq
    %v63 = vshrl.u32 %v62, 7
    %v64 = vsub.s32 0, %v63
    %v65 = vrot.slane %v47, %v64
    %v66 = vlaneseq
    %v67 = vshrl.u32 %v66, 7
    %v68 = vsub.s32 0, %v67
    %v69 = vrot.slane %v48, %v68
    %v70 = vlaneseq
    %v71 = vshrl.u32 %v70, 7
    %v72 = vsub.s32 0, %v71
    %v73 = vrot.slane %v49, %v72
    %74 = vset.pattern.permute.xlu0 0
    %75 = vperm.xlu0 %74, %v61
    %v76 = vpop.permute.xlu0 %75
    %78 = vset.pattern.permute.xlu0 0
    %79 = vperm.xlu0 %78, %v65
    %v80 = vpop.permute.xlu0 %79
    %82 = vset.pattern.permute.xlu0 0
    %83 = vperm.xlu0 %82, %v69
    %v84 = vpop.permute.xlu0 %83
    %86 = vset.pattern.permute.xlu0 0
    %87 = vperm.xlu0 %86, %v73
    %v88 = vpop.permute.xlu0 %87
    %v90 = vmul.f32 %v38, %v76
    %v91 = vmul.f32 %v39, %v80
    %v92 = vmul.f32 %v40, %v84
    %v93 = vmul.f32 %v41, %v88
    %v94 = vmul.f32 %v42, %v76
    %v95 = vmul.f32 %v43, %v80
    %v96 = vmul.f32 %v44, %v84
    %v97 = vmul.f32 %v45, %v88
    %v102 = vlaneseq
    %v103 = vshrl.u32 %v102, 7
    %v104 = vsub.s32 0, %v103
    %v105 = vrot.slane %v50, %v104
    %v106 = vlaneseq
    %v107 = vshrl.u32 %v106, 7
    %v108 = vsub.s32 0, %v107
    %v109 = vrot.slane %v51, %v108
    %v110 = vlaneseq
    %v111 = vshrl.u32 %v110, 7
    %v112 = vsub.s32 0, %v111
    %v113 = vrot.slane %v52, %v112
    %v114 = vlaneseq
    %v115 = vshrl.u32 %v114, 7
    %v116 = vsub.s32 0, %v115
    %v117 = vrot.slane %v53, %v116
    %118 = vset.pattern.permute.xlu0 0
    %119 = vperm.xlu0 %118, %v105
    %v120 = vpop.permute.xlu0 %119
    %122 = vset.pattern.permute.xlu0 0
    %123 = vperm.xlu0 %122, %v109
    %v124 = vpop.permute.xlu0 %123
    %126 = vset.pattern.permute.xlu0 0
    %127 = vperm.xlu0 %126, %v113
    %v128 = vpop.permute.xlu0 %127
    %130 = vset.pattern.permute.xlu0 0
    %131 = vperm.xlu0 %130, %v117
    %v132 = vpop.permute.xlu0 %131
    %v134 = vadd.f32 %v90, %v120
    %v135 = vadd.f32 %v91, %v124
    %v136 = vadd.f32 %v92, %v128
    %v137 = vadd.f32 %v93, %v132
    %v138 = vadd.f32 %v94, %v120
    %v139 = vadd.f32 %v95, %v124
    %v140 = vadd.f32 %v96, %v128
    %v141 = vadd.f32 %v97, %v132
    %v142 = vmax.f32 %v134, 0.0
    %v143 = vmax.f32 %v135, 0.0
    %v144 = vmax.f32 %v136, 0.0
    %v145 = vmax.f32 %v137, 0.0
    %v146 = vmax.f32 %v138, 0.0
    %v147 = vmax.f32 %v139, 0.0
    %v148 = vmax.f32 %v140, 0.0
    %v149 = vmax.f32 %v141, 0.0
    %v150 = vld [vmem:[%s4] sm:$0x1]
    %v151 = vld [vmem:[%s4 + $0x1] sm:$0x1]
    %v152 = vld [vmem:[%s4 + $0x2] sm:$0x1]
    %v153 = vld [vmem:[%s4 + $0x3] sm:$0x1]
    %v154 = vld [vmem:[%s3] sm:$0xf]
    %v157 = vunpack.c.l.s4 1966171168
    %v158 = vunpack.c.0.s8 %v157
    %v159 = vlaneseq
    %v160 = vshrl.u32 %v159, 7
    %v161 = vsub.s32 %v158, %v160
    %v162 = vrot.slane %v154, %v161
    %v163 = vcombine.high %v162, %v162
    %v165 = vunpack.c.l.s4 1966171168
    %v166 = vunpack.c.0.s8 %v165
    %v167 = vlaneseq
    %v168 = vshrl.u32 %v167, 7
    %v169 = vsub.s32 %v166, %v168
    %v170 = vrot.slane %v162, %v169
    %v172 = vunpack.c.l.s4 1966171168
    %v173 = vunpack.c.0.s8 %v172
    %v174 = vlaneseq
    %v175 = vshrl.u32 %v174, 7
    %v176 = vsub.s32 %v173, %v175
    %v177 = vrot.slane %v163, %v176
    %v178 = vcombine.high %v170, %v170
    %v179 = vcombine.high %v177, %v177
    %v180 = vlaneseq
    %v181 = vshrl.u32 %v180, 7
    %v182 = vsub.s32 0, %v181
    %v183 = vrot.slane %v170, %v182
    %v184 = vlaneseq
    %v185 = vshrl.u32 %v184, 7
    %v186 = vsub.s32 0, %v185
    %v187 = vrot.slane %v177, %v186
    %v188 = vlaneseq
    %v189 = vshrl.u32 %v188, 7
    %v190 = vsub.s32 0, %v189
    %v191 = vrot.slane %v178, %v190
    %v192 = vlaneseq
    %v193 = vshrl.u32 %v192, 7
    %v194 = vsub.s32 0, %v193
    %v195 = vrot.slane %v179, %v194
    %196 = vset.pattern.permute.xlu0 0
    %197 = vperm.xlu0 %196, %v183
    %v198 = vpop.permute.xlu0 %197
    %200 = vset.pattern.permute.xlu0 0
    %201 = vperm.xlu0 %200, %v187
    %v202 = vpop.permute.xlu0 %201
    %204 = vset.pattern.permute.xlu0 0
    %205 = vperm.xlu0 %204, %v191
    %v206 = vpop.permute.xlu0 %205
    %208 = vset.pattern.permute.xlu0 0
    %209 = vperm.xlu0 %208, %v195
    %v210 = vpop.permute.xlu0 %209
    %v212 = vmul.f32 %v198, %v142
    %v213 = vmul.f32 %v202, %v142
    %v214 = vmul.f32 %v206, %v142
    %v215 = vmul.f32 %v210, %v142
    %v216 = vmul.f32 %v198, %v146
    %v217 = vmul.f32 %v202, %v146
    %v218 = vmul.f32 %v206, %v146
    %v219 = vmul.f32 %v210, %v146
    %220 = vset.pattern.permute.xlu0 1
    %221 = vperm.xlu0 %220, %v183
    %v222 = vpop.permute.xlu0 %221
    %224 = vset.pattern.permute.xlu0 1
    %225 = vperm.xlu0 %224, %v187
    %v226 = vpop.permute.xlu0 %225
    %228 = vset.pattern.permute.xlu0 1
    %229 = vperm.xlu0 %228, %v191
    %v230 = vpop.permute.xlu0 %229
    %232 = vset.pattern.permute.xlu0 1
    %233 = vperm.xlu0 %232, %v195
    %v234 = vpop.permute.xlu0 %233
    %v236 = vmul.f32 %v222, %v143
    %v237 = vmul.f32 %v226, %v143
    %v238 = vmul.f32 %v230, %v143
    %v239 = vmul.f32 %v234, %v143
    %v240 = vmul.f32 %v222, %v147
    %v241 = vmul.f32 %v226, %v147
    %v242 = vmul.f32 %v230, %v147
    %v243 = vmul.f32 %v234, %v147
    %v244 = vadd.f32 %v212, %v236
    %v245 = vadd.f32 %v213, %v237
    %v246 = vadd.f32 %v214, %v238
    %v247 = vadd.f32 %v215, %v239
    %v248 = vadd.f32 %v216, %v240
    %v249 = vadd.f32 %v217, %v241
    %v250 = vadd.f32 %v218, %v242
    %v251 = vadd.f32 %v219, %v243
    %252 = vset.pattern.permute.xlu0 2
    %253 = vperm.xlu0 %252, %v183
    %v254 = vpop.permute.xlu0 %253
    %256 = vset.pattern.permute.xlu0 2
    %257 = vperm.xlu0 %256, %v187
    %v258 = vpop.permute.xlu0 %257
    %260 = vset.pattern.permute.xlu0 2
    %261 = vperm.xlu0 %260, %v191
    %v262 = vpop.permute.xlu0 %261
    %264 = vset.pattern.permute.xlu0 2
    %265 = vperm.xlu0 %264, %v195
    %v266 = vpop.permute.xlu0 %265
    %v268 = vmul.f32 %v254, %v144
    %v269 = vmul.f32 %v258, %v144
    %v270 = vmul.f32 %v262, %v144
    %v271 = vmul.f32 %v266, %v144
    %v272 = vmul.f32 %v254, %v148
    %v273 = vmul.f32 %v258, %v148
    %v274 = vmul.f32 %v262, %v148
    %v275 = vmul.f32 %v266, %v148
    %v276 = vadd.f32 %v244, %v268
    %v277 = vadd.f32 %v245, %v269
    %v278 = vadd.f32 %v246, %v270
    %v279 = vadd.f32 %v247, %v271
    %v280 = vadd.f32 %v248, %v272
    %v281 = vadd.f32 %v249, %v273
    %v282 = vadd.f32 %v250, %v274
    %v283 = vadd.f32 %v251, %v275
    %284 = vset.pattern.permute.xlu0 3
    %285 = vperm.xlu0 %284, %v183
    %v286 = vpop.permute.xlu0 %285
    %288 = vset.pattern.permute.xlu0 3
    %289 = vperm.xlu0 %288, %v187
    %v290 = vpop.permute.xlu0 %289
    %292 = vset.pattern.permute.xlu0 3
    %293 = vperm.xlu0 %292, %v191
    %v294 = vpop.permute.xlu0 %293
    %296 = vset.pattern.permute.xlu0 3
    %297 = vperm.xlu0 %296, %v195
    %v298 = vpop.permute.xlu0 %297
    %v300 = vmul.f32 %v286, %v145
    %v301 = vmul.f32 %v290, %v145
    %v302 = vmul.f32 %v294, %v145
    %v303 = vmul.f32 %v298, %v145
    %v304 = vmul.f32 %v286, %v149
    %v305 = vmul.f32 %v290, %v149
    %v306 = vmul.f32 %v294, %v149
    %v307 = vmul.f32 %v298, %v149
    %v308 = vadd.f32 %v276, %v300
    %v309 = vadd.f32 %v277, %v301
    %v310 = vadd.f32 %v278, %v302
    %v311 = vadd.f32 %v279, %v303
    %v312 = vadd.f32 %v280, %v304
    %v313 = vadd.f32 %v281, %v305
    %v314 = vadd.f32 %v282, %v306
    %v315 = vadd.f32 %v283, %v307
    %v320 = vlaneseq
    %v321 = vshrl.u32 %v320, 7
    %v322 = vsub.s32 0, %v321
    %v323 = vrot.slane %v150, %v322
    %v324 = vlaneseq
    %v325 = vshrl.u32 %v324, 7
    %v326 = vsub.s32 0, %v325
    %v327 = vrot.slane %v151, %v326
    %v328 = vlaneseq
    %v329 = vshrl.u32 %v328, 7
    %v330 = vsub.s32 0, %v329
    %v331 = vrot.slane %v152, %v330
    %v332 = vlaneseq
    %v333 = vshrl.u32 %v332, 7
    %v334 = vsub.s32 0, %v333
    %v335 = vrot.slane %v153, %v334
    %336 = vset.pattern.permute.xlu0 0
    %337 = vperm.xlu0 %336, %v323
    %v338 = vpop.permute.xlu0 %337
    %340 = vset.pattern.permute.xlu0 0
    %341 = vperm.xlu0 %340, %v327
    %v342 = vpop.permute.xlu0 %341
    %344 = vset.pattern.permute.xlu0 0
    %345 = vperm.xlu0 %344, %v331
    %v346 = vpop.permute.xlu0 %345
    %348 = vset.pattern.permute.xlu0 0
    %349 = vperm.xlu0 %348, %v335
    %v350 = vpop.permute.xlu0 %349
    %v352 = vadd.f32 %v308, %v338
    %v353 = vadd.f32 %v309, %v342
    %v354 = vadd.f32 %v310, %v346
    %v355 = vadd.f32 %v311, %v350
    %v356 = vadd.f32 %v312, %v338
    %v357 = vadd.f32 %v313, %v342
    %v358 = vadd.f32 %v314, %v346
    %v359 = vadd.f32 %v315, %v350
    %368 = vrot.lane.b32.xlu0 %v352, 112
    %v369 = vpop.permute.xlu0 %368
    %370 = vrot.lane.b32.xlu0 %v353, 112
    %v371 = vpop.permute.xlu0 %370
    %372 = vrot.lane.b32.xlu0 %v354, 112
    %v373 = vpop.permute.xlu0 %372
    %374 = vrot.lane.b32.xlu0 %v355, 112
    %v375 = vpop.permute.xlu0 %374
    %376 = vrot.lane.b32.xlu0 %v356, 112
    %v377 = vpop.permute.xlu0 %376
    %378 = vrot.lane.b32.xlu0 %v357, 112
    %v379 = vpop.permute.xlu0 %378
    %380 = vrot.lane.b32.xlu0 %v358, 112
    %v381 = vpop.permute.xlu0 %380
    %382 = vrot.lane.b32.xlu0 %v359, 112
    %v383 = vpop.permute.xlu0 %382
    %v392 = vmax.f32 %v352, %v369
    %v393 = vmax.f32 %v353, %v371
    %v394 = vmax.f32 %v354, %v373
    %v395 = vmax.f32 %v355, %v375
    %v396 = vmax.f32 %v356, %v377
    %v397 = vmax.f32 %v357, %v379
    %v398 = vmax.f32 %v358, %v381
    %v399 = vmax.f32 %v359, %v383
    %v400 = vld [vmem:[%s5] sm:$0xff]
    %v401 = vld [vmem:[%s5 + $0x8] sm:$0xff]
    %vm402 = vcmask 130048
    %v404 = vsel %vm402, %v392, 0
    %v407 = vsel %vm402, %v393, 0
    %v410 = vsel %vm402, %v394, 0
    %v413 = vsel %vm402, %v395, 0
    %v416 = vsel %vm402, %v396, 0
    %v419 = vsel %vm402, %v397, 0
    %v422 = vsel %vm402, %v398, 0
    %v425 = vsel %vm402, %v399, 0
    %427 = vmatprep.subr.mxu0 0.0
    %428 = vmatpush1.msra.mxu0 %v400
    %429 = vmatprep.subr.mxu0 0.0
    %430 = vmatpush1.msra.mxu0 %v401
    %431 = vmatprep.subr.mxu0 0.0
    %432 = vmatpush1.msra.mxu0 0.0
    %433 = vmatprep.subr.mxu0 0.0
    %434 = vmatpush1.msra.mxu0 0.0
    %435 = vmatprep.subr.mxu0 0.0
    %436 = vmatpush1.msra.mxu0 0.0
    %437 = vmatprep.subr.mxu0 0.0
    %438 = vmatpush1.msra.mxu0 0.0
    %439 = vmatprep.subr.mxu0 0.0
    %440 = vmatpush1.msra.mxu0 0.0
    %441 = vmatprep.subr.mxu0 0.0
    %442 = vmatpush1.msra.mxu0 0.0
    %443 = vmatprep.subr.mxu0 0.0
    %444 = vmatpush1.msra.mxu0 0.0
    %445 = vmatprep.subr.mxu0 0.0
    %446 = vmatpush1.msra.mxu0 0.0
    %447 = vmatprep.subr.mxu0 0.0
    %448 = vmatpush1.msra.mxu0 0.0
    %449 = vmatprep.subr.mxu0 0.0
    %450 = vmatpush1.msra.mxu0 0.0
    %451 = vmatprep.subr.mxu0 0.0
    %452 = vmatpush1.msra.mxu0 0.0
    %453 = vmatprep.subr.mxu0 0.0
    %454 = vmatpush1.msra.mxu0 0.0
    %455 = vmatprep.subr.mxu0 0.0
    %456 = vmatpush1.msra.mxu0 0.0
    %457 = vmatprep.subr.mxu0 0.0
    %458 = vmatpush1.msra.mxu0 0.0
    %459 = vmatprep.subr.mxu0 0.0
    %460 = vmatpush1.msra.mxu0 0.0
    %461 = vmatprep.subr.mxu0 0.0
    %462 = vmatpush1.msra.mxu0 0.0
    %463 = vmatprep.subr.mxu0 0.0
    %464 = vmatpush1.msra.mxu0 0.0
    %465 = vmatprep.subr.mxu0 0.0
    %466 = vmatpush1.msra.mxu0 0.0
    %467 = vmatprep.subr.mxu0 0.0
    %468 = vmatpush1.msra.mxu0 0.0
    %469 = vmatprep.subr.mxu0 0.0
    %470 = vmatpush1.msra.mxu0 0.0
    %471 = vmatprep.subr.mxu0 0.0
    %472 = vmatpush1.msra.mxu0 0.0
    %473 = vmatprep.subr.mxu0 0.0
    %474 = vmatpush1.msra.mxu0 0.0
    %475 = vmatprep.subr.mxu0 0.0
    %476 = vmatpush1.msra.mxu0 0.0
    %477 = vmatprep.subr.mxu0 0.0
    %478 = vmatpush1.msra.mxu0 0.0
    %479 = vmatprep.subr.mxu0 0.0
    %480 = vmatpush1.msra.mxu0 0.0
    %481 = vmatprep.subr.mxu0 0.0
    %482 = vmatpush1.msra.mxu0 0.0
    %483 = vmatprep.subr.mxu0 0.0
    %484 = vmatpush1.msra.mxu0 0.0
    %485 = vmatprep.subr.mxu0 0.0
    %486 = vmatpush1.msra.mxu0 0.0
    %487 = vmatprep.subr.mxu0 0.0
    %488 = vmatpush1.msra.mxu0 0.0
    %489 = vmatprep.subr.mxu0 0.0
    %490 = vmatpush1.msra.mxu0 0.0
    %491 = vmatprep.mubr.f32.mxu0 0.0
    %492 = vmatmul.mubr.f32.gmra.mrb[0].mxu0 %v404
    %v493 = vpop.f32.mrb[0].mxu0
    %v494 = vadd.f32 0.0, %v493
    %v495 = vpop.f32.mrb[0].mxu0
    %496 = vmatprep.mubr.f32.mxu0 0.0
    %497 = vmatmul.mubr.f32.gmra.mrb[0].mxu0 %v407
    %v498 = vpop.f32.mrb[0].mxu0
    %v499 = vadd.f32 0.0, %v498
    %v500 = vpop.f32.mrb[0].mxu0
    %501 = vmatprep.mubr.f32.mxu0 0.0
    %502 = vmatmul.mubr.f32.gmra.mrb[0].mxu0 %v410
    %v503 = vpop.f32.mrb[0].mxu0
    %v504 = vadd.f32 0.0, %v503
    %v505 = vpop.f32.mrb[0].mxu0
    %506 = vmatprep.mubr.f32.mxu0 0.0
    %507 = vmatmul.mubr.f32.gmra.mrb[0].mxu0 %v413
    %v508 = vpop.f32.mrb[0].mxu0
    %v509 = vadd.f32 0.0, %v508
    %v510 = vpop.f32.mrb[0].mxu0
    %511 = vmatprep.mubr.f32.mxu0 0.0
    %512 = vmatmul.mubr.f32.gmra.mrb[0].mxu0 %v416
    %v513 = vpop.f32.mrb[0].mxu0
    %v514 = vadd.f32 0.0, %v513
    %v515 = vpop.f32.mrb[0].mxu0
    %516 = vmatprep.mubr.f32.mxu0 0.0
    %517 = vmatmul.mubr.f32.gmra.mrb[0].mxu0 %v419
    %v518 = vpop.f32.mrb[0].mxu0
    %v519 = vadd.f32 0.0, %v518
    %v520 = vpop.f32.mrb[0].mxu0
    %521 = vmatprep.mubr.f32.mxu0 0.0
    %522 = vmatmul.mubr.f32.gmra.mrb[0].mxu0 %v422
    %v523 = vpop.f32.mrb[0].mxu0
    %v524 = vadd.f32 0.0, %v523
    %v525 = vpop.f32.mrb[0].mxu0
    %526 = vmatprep.mubr.f32.mxu0 0.0
    %527 = vmatmul.mubr.f32.gmra.mrb[0].mxu0 %v425
    %v528 = vpop.f32.mrb[0].mxu0
    %v529 = vadd.f32 0.0, %v528
    %v530 = vpop.f32.mrb[0].mxu0
    %531 = vdwg.mxu0
    %540 = vrot.lane.b32.xlu0 %v494, 120
    %v541 = vpop.permute.xlu0 %540
    %542 = vrot.lane.b32.xlu0 %v499, 120
    %v543 = vpop.permute.xlu0 %542
    %544 = vrot.lane.b32.xlu0 %v504, 120
    %v545 = vpop.permute.xlu0 %544
    %546 = vrot.lane.b32.xlu0 %v509, 120
    %v547 = vpop.permute.xlu0 %546
    %548 = vrot.lane.b32.xlu0 %v514, 120
    %v549 = vpop.permute.xlu0 %548
    %550 = vrot.lane.b32.xlu0 %v519, 120
    %v551 = vpop.permute.xlu0 %550
    %552 = vrot.lane.b32.xlu0 %v524, 120
    %v553 = vpop.permute.xlu0 %552
    %554 = vrot.lane.b32.xlu0 %v529, 120
    %v555 = vpop.permute.xlu0 %554
    %v564 = vmax.f32 %v494, %v541
    %v565 = vmax.f32 %v499, %v543
    %v566 = vmax.f32 %v504, %v545
    %v567 = vmax.f32 %v509, %v547
    %v568 = vmax.f32 %v514, %v549
    %v569 = vmax.f32 %v519, %v551
    %v570 = vmax.f32 %v524, %v553
    %v571 = vmax.f32 %v529, %v555
    %vm572 = vcmask 64512
    %573 = vst.msk [vmem:[#allocation5] sm:$0xff] %vm572, %v564
    %574 = vst.msk [vmem:[#allocation5 + $0x8] sm:$0xff] %vm572, %v565
    %575 = vst.msk [vmem:[#allocation5 + $0x10] sm:$0xff] %vm572, %v566
    %576 = vst.msk [vmem:[#allocation5 + $0x18] sm:$0xff] %vm572, %v567
    %577 = vst.msk [vmem:[#allocation5 + $0x20] sm:$0xff] %vm572, %v568
    %578 = vst.msk [vmem:[#allocation5 + $0x28] sm:$0xff] %vm572, %v569
    %579 = vst.msk [vmem:[#allocation5 + $0x30] sm:$0xff] %vm572, %v570
    %580 = vst.msk [vmem:[#allocation5 + $0x38] sm:$0xff] %vm572, %v571
    // Predicated region
    $region30: #{tpu_custom_call.1} parent=1 // pred_check
      _
    $region31: #{tpu_custom_call.1} parent=1 // pred_check_branch
      %582 = sbr.rel (0) target = $region33
    $region32: #{tpu_custom_call.1} parent=1 // pred_region
      %s584 = ssub.s32 1024, 1024
      %585 = vsyncadd [#allocation4], %s584
      %s586 = sshll.u32 [#allocation5], 4
      %s587 = int_to_ptr.vmem [resolvable:$true] %s586
      %592 = dma.vmem_to_hbm [thread:$0]  %s587, 1024, %s6, [#allocation4], 128, 128, 8
    $region33: #{tpu_custom_call.1} parent=1 // pred_fallthru
      _
    // Predicated region
    $region34: #{tpu_custom_call.1} parent=1 // pred_check
      _
    $region35: #{tpu_custom_call.1} parent=1 // pred_check_branch
      %594 = sbr.rel (0) target = $region37
    $region36: #{tpu_custom_call.1} parent=1 // pred_region
      %595 = dma.done [#allocation4], 1024
    $region37: #{tpu_custom_call.1} parent=1 // pred_fallthru
      _
    %596 = vsyncpa [#allocation3], 1
    %597 = vsyncpa [#allocation4], 1

</llo_original>
